<compile_context>
chip_gen: v6e
topology: v6e:2x2x1
jax: 0.10.0
libtpu: 0.0.40
codegen_flags: <defaults>
</compile_context>

<pallas_src>
import jax
import jax.numpy as jnp
from jax import lax
from jax.experimental import pallas as pl
from jax.experimental.pallas import tpu as pltpu


def lstm_rnn_kernel(x_ref, lstm_ref, head_ref, out_ref):
    """Forward pass, fully resident in VMEM, two unrolled LSTM steps.

    x_ref:    (B, T, I)    raw batch-first input (only t=0,1 are read)
    lstm_ref: (I+H+1, 4H)  rows [0:I)=w_ih^T, [I:I+H)=w_hh^T, [I+H]=b_ih+b_hh
    head_ref: (H+1, O)     rows [0:H)=w_lin^T, [H]=b_lin
    out_ref:  (B, O)
    """
    B = x_ref.shape[0]
    I = x_ref.shape[2]
    H4 = lstm_ref.shape[1]
    H = H4 // 4

    # Unpack the fused LSTM parameter slab (static sublane slices, no copies
    # beyond what the compiler needs for layout).
    w_ih = lstm_ref[0:I, :]               # (I, 4H)
    w_hh = lstm_ref[I:I + H, :]           # (H, 4H)
    b = lstm_ref[I + H:I + H + 1, :]      # (1, 4H)

    # Only timesteps 0 and 1 matter for out[:, 1, :].
    x = x_ref[...]                        # (B, T, I), ~1 KB
    x0 = x[:, 0, :]                       # (B, I)
    x1 = x[:, 1, :]                       # (B, I)

    # Input projections (MXU is idle; two tiny pushes are cheaper than a
    # wrapper-side reshape round-trip through HBM).
    xp0 = jnp.dot(x0, w_ih, preferred_element_type=jnp.float32) + b   # (B, 4H)
    xp1 = jnp.dot(x1, w_ih, preferred_element_type=jnp.float32) + b   # (B, 4H)

    # Lane mask marking the g-gate block of the 4H axis (gate order i,f,g,o).
    lane = lax.broadcasted_iota(jnp.int32, (B, H4), dimension=1)
    is_g = jnp.logical_and(lane >= 2 * H, lane < 3 * H)

    def activate(gates):
        # Single full-tile sigmoid EUP push; tanh on g-lanes recovered via
        # tanh(x) = 2*sigmoid(2x) - 1 with cheap VPU mask ops.
        scaled = jnp.where(is_g, gates + gates, gates)
        sig = jax.nn.sigmoid(scaled)
        act = jnp.where(is_g, sig + sig - 1.0, sig)
        i_g = act[:, 0:H]
        f_g = act[:, H:2 * H]
        g_g = act[:, 2 * H:3 * H]
        o_g = act[:, 3 * H:4 * H]
        return i_g, f_g, g_g, o_g

    # ---- timestep 0: h_prev = c_prev = 0, so gates = xproj and c = i * g ----
    i0, _f0, g0, o0 = activate(xp0)
    c0 = i0 * g0
    h0 = o0 * jnp.tanh(c0)

    # ---- timestep 1: only one recurrent matmul on the critical path ----
    gates1 = xp1 + jnp.dot(h0, w_hh, preferred_element_type=jnp.float32)
    i1, f1, g1, o1 = activate(gates1)
    c1 = f1 * c0 + i1 * g1
    h1 = o1 * jnp.tanh(c1)                      # == out[:, 1, :]

    # relu -> linear head (weights + bias from the packed head slab).
    w_lin = head_ref[0:H, :]                    # (H, O)
    b_lin = head_ref[H:H + 1, :]                # (1, O)
    out_ref[...] = (
        jnp.dot(jnp.maximum(h1, 0.0), w_lin, preferred_element_type=jnp.float32)
        + b_lin
    )


def init_params(key, input_size, hidden_size, output_size):
    """Deterministic init mimicking PyTorch's U(-1/sqrt(H), 1/sqrt(H))."""
    k_lstm = 1.0 / jnp.sqrt(hidden_size)
    k_lin = 1.0 / jnp.sqrt(hidden_size)
    keys = jax.random.split(key, 6)
    w_ih = jax.random.uniform(keys[0], (4 * hidden_size, input_size),
                              jnp.float32, -k_lstm, k_lstm)
    w_hh = jax.random.uniform(keys[1], (4 * hidden_size, hidden_size),
                              jnp.float32, -k_lstm, k_lstm)
    b_ih = jax.random.uniform(keys[2], (4 * hidden_size,),
                              jnp.float32, -k_lstm, k_lstm)
    b_hh = jax.random.uniform(keys[3], (4 * hidden_size,),
                              jnp.float32, -k_lstm, k_lstm)
    w_lin = jax.random.uniform(keys[4], (output_size, hidden_size),
                               jnp.float32, -k_lin, k_lin)
    b_lin = jax.random.uniform(keys[5], (output_size,),
                               jnp.float32, -k_lin, k_lin)
    return dict(w_ih=w_ih, w_hh=w_hh, b_ih=b_ih, b_hh=b_hh,
                w_lin=w_lin, b_lin=b_lin)


def prepare_params(params):
    """One-time packing of parameters into two kernel-ready VMEM slabs.

    Done ONCE at init so the per-call forward has zero preprocessing HLOs.
    """
    w_ih = jnp.asarray(params["w_ih"], jnp.float32)        # (4H, I)
    w_hh = jnp.asarray(params["w_hh"], jnp.float32)        # (4H, H)
    b = (jnp.asarray(params["b_ih"], jnp.float32)
         + jnp.asarray(params["b_hh"], jnp.float32))       # (4H,)
    H = w_hh.shape[1]
    # (I + H + 1, 4H): [w_ih^T ; w_hh^T ; fused bias row]
    lstm_slab = jnp.concatenate(
        [w_ih.T, w_hh.T, b.reshape(1, 4 * H)], axis=0)
    w_lin = jnp.asarray(params["w_lin"], jnp.float32)      # (O, H)
    b_lin = jnp.asarray(params["b_lin"], jnp.float32)      # (O,)
    O = w_lin.shape[0]
    # (H + 1, O): [w_lin^T ; bias row]
    head_slab = jnp.concatenate([w_lin.T, b_lin.reshape(1, O)], axis=0)
    return dict(lstm_slab=jax.device_put(lstm_slab),
                head_slab=jax.device_put(head_slab),
                hidden_size=H, output_size=O)


def lstm_rnn_forward(x, packed):
    """x: (B, T, I) float32, packed = prepare_params(...)  ->  (B, O) float32."""
    B, T, I = x.shape
    if T < 2:
        # PyTorch's out[:, 1, :] would raise for T < 2; fail loudly here too.
        raise ValueError(f"LSTM_RNN forward needs seq_len >= 2, got T={T}")
    H = packed["hidden_size"]
    O = packed["output_size"]
    lstm_slab = packed["lstm_slab"]
    head_slab = packed["head_slab"]

    flops = 2 * (2 * B * I * 4 * H + B * H * 4 * H + B * H * O)
    transcendentals = B * (2 * 4 * H + 2 * H)   # 2 full-tile sigmoids + 2 tanh(c)
    bytes_accessed = 4 * (x.size + lstm_slab.size + head_slab.size + B * O)

    vmem = pl.BlockSpec(memory_space=pltpu.MemorySpace.VMEM)
    # NOTE: at large B, add a batch grid with dimension_semantics=("parallel",)
    # (keeps both v7x TensorCores busy); at B=2 it would be pure overhead.
    return pl.pallas_call(
        lstm_rnn_kernel,
        out_shape=jax.ShapeDtypeStruct((B, O), jnp.float32),
        in_specs=[vmem, vmem, vmem],
        out_specs=vmem,
        cost_estimate=pl.CostEstimate(
            flops=flops,
            transcendentals=transcendentals,
            bytes_accessed=bytes_accessed),
    )(jnp.asarray(x, jnp.float32), lstm_slab, head_slab)


def reference_forward(x, params):
    """Pure-JAX reference identical to the PyTorch forward (full-T scan)."""
    B, T, I = x.shape
    H = params["w_hh"].shape[1]
    w_ih, w_hh = params["w_ih"], params["w_hh"]
    b = params["b_ih"] + params["b_hh"]

    def step(carry, x_t):
        h, c = carry
        gates = x_t @ w_ih.T + h @ w_hh.T + b
        i_g = jax.nn.sigmoid(gates[:, 0:H])
        f_g = jax.nn.sigmoid(gates[:, H:2 * H])
        g_g = jnp.tanh(gates[:, 2 * H:3 * H])
        o_g = jax.nn.sigmoid(gates[:, 3 * H:4 * H])
        c_new = f_g * c + i_g * g_g
        h_new = o_g * jnp.tanh(c_new)
        return (h_new, c_new), h_new

    h0 = jnp.zeros((B, H), jnp.float32)
    _, hs = lax.scan(step, (h0, h0), jnp.transpose(x, (1, 0, 2)))  # (T, B, H)
    h1 = hs[1]                                                     # out[:, 1, :]
    return jnp.maximum(h1, 0.0) @ params["w_lin"].T + params["b_lin"]


if __name__ == "__main__":
    B, T = 2, 8
    input_layer_size, hidden_layer_size, output_layer_size = 16, 32, 8

    key = jax.random.PRNGKey(0)
    key_x, key_p = jax.random.split(key)
    x = jax.random.normal(key_x, (B, T, input_layer_size), jnp.float32)
    params = init_params(key_p, input_layer_size, hidden_layer_size,
                         output_layer_size)
    packed = prepare_params(params)   # one-time weight packing (not per call)

    out = lstm_rnn_forward(x, packed)
    out = jax.block_until_ready(out)

    ref = reference_forward(x, params)
    assert out.shape == (B, output_layer_size)
    assert jnp.allclose(out, ref, atol=1e-5, rtol=1e-5), "mismatch vs reference"

    print("KERNEL_OK")
</pallas_src>

<mosaic_0001>
module attributes {stable_mosaic.version = 11 : i64} {
  func.func @lstm_rnn_kernel(%arg0: memref<2x8x16xf32, #tpu.memory_space<vmem>>, %arg1: memref<49x128xf32, #tpu.memory_space<vmem>>, %arg2: memref<33x8xf32, #tpu.memory_space<vmem>>, %arg3: memref<2x8xf32, #tpu.memory_space<vmem>>) attributes {dimension_semantics = [], scalar_prefetch = 0 : i64, scratch_operands = 0 : i64, tpu.core_type = #tpu.core_type<tc>} {
    %c0 = arith.constant 0 : index
    %c0_0 = arith.constant 0 : index
    %0 = vector.load %arg1[%c0, %c0_0] : memref<49x128xf32, #tpu.memory_space<vmem>>, vector<16x128xf32>
    %c16 = arith.constant 16 : index
    %c0_1 = arith.constant 0 : index
    %1 = vector.load %arg1[%c16, %c0_1] : memref<49x128xf32, #tpu.memory_space<vmem>>, vector<32x128xf32>
    %c48 = arith.constant 48 : index
    %c0_2 = arith.constant 0 : index
    %2 = vector.load %arg1[%c48, %c0_2] : memref<49x128xf32, #tpu.memory_space<vmem>>, vector<1x128xf32>
    %c0_3 = arith.constant 0 : index
    %c0_4 = arith.constant 0 : index
    %c0_5 = arith.constant 0 : index
    %3 = vector.load %arg0[%c0_3, %c0_4, %c0_5] : memref<2x8x16xf32, #tpu.memory_space<vmem>>, vector<2x8x16xf32>
    %4 = vector.extract_strided_slice %3 {offsets = [0, 0, 0], sizes = [2, 1, 16], strides = [1, 1, 1]} : vector<2x8x16xf32> to vector<2x1x16xf32>
    %5 = vector.shape_cast %4 : vector<2x1x16xf32> to vector<2x16xf32>
    %6 = vector.extract_strided_slice %3 {offsets = [0, 1, 0], sizes = [2, 1, 16], strides = [1, 1, 1]} : vector<2x8x16xf32> to vector<2x1x16xf32>
    %7 = vector.shape_cast %6 : vector<2x1x16xf32> to vector<2x16xf32>
    %cst = arith.constant dense<0.000000e+00> : vector<2x128xf32>
    %8 = tpu.matmul %5, %0, %cst {dimension_numbers = #tpu.dot_dimension_numbers<[1], [0], [0], [1], [0, 0, 1, 1], [], []>} : vector<2x16xf32>, vector<16x128xf32>, vector<2x128xf32> -> vector<2x128xf32>
    %9 = vector.broadcast %2 : vector<1x128xf32> to vector<2x128xf32>
    %10 = arith.addf %8, %9 : vector<2x128xf32>
    %cst_6 = arith.constant dense<0.000000e+00> : vector<2x128xf32>
    %11 = tpu.matmul %7, %0, %cst_6 {dimension_numbers = #tpu.dot_dimension_numbers<[1], [0], [0], [1], [0, 0, 1, 1], [], []>} : vector<2x16xf32>, vector<16x128xf32>, vector<2x128xf32> -> vector<2x128xf32>
    %12 = vector.broadcast %2 : vector<1x128xf32> to vector<2x128xf32>
    %13 = arith.addf %11, %12 : vector<2x128xf32>
    %14 = tpu.iota {dimensions = array<i32: 1>} : vector<2x128xi32>
    %c64_i32 = arith.constant 64 : i32
    %15 = vector.broadcast %c64_i32 : i32 to vector<2x128xi32>
    %16 = arith.cmpi sge, %14, %15 : vector<2x128xi32>
    %c96_i32 = arith.constant 96 : i32
    %17 = vector.broadcast %c96_i32 : i32 to vector<2x128xi32>
    %18 = arith.cmpi slt, %14, %17 : vector<2x128xi32>
    %19 = arith.andi %16, %18 : vector<2x128xi1>
    %20 = arith.addf %10, %10 : vector<2x128xf32>
    %21 = arith.select %19, %20, %10 : vector<2x128xi1>, vector<2x128xf32>
    %22 = arith.negf %21 : vector<2x128xf32>
    %23 = math.exp %22 : vector<2x128xf32>
    %cst_7 = arith.constant 1.000000e+00 : f32
    %24 = vector.broadcast %cst_7 : f32 to vector<2x128xf32>
    %25 = arith.addf %24, %23 : vector<2x128xf32>
    %26 = arith.divf %24, %25 : vector<2x128xf32>
    %27 = arith.addf %26, %26 : vector<2x128xf32>
    %cst_8 = arith.constant 1.000000e+00 : f32
    %28 = vector.broadcast %cst_8 : f32 to vector<2x128xf32>
    %29 = arith.subf %27, %28 : vector<2x128xf32>
    %30 = arith.select %19, %29, %26 : vector<2x128xi1>, vector<2x128xf32>
    %31 = vector.extract_strided_slice %30 {offsets = [0, 0], sizes = [2, 32], strides = [1, 1]} : vector<2x128xf32> to vector<2x32xf32>
    %32 = vector.extract_strided_slice %30 {offsets = [0, 64], sizes = [2, 32], strides = [1, 1]} : vector<2x128xf32> to vector<2x32xf32>
    %33 = vector.extract_strided_slice %30 {offsets = [0, 96], sizes = [2, 32], strides = [1, 1]} : vector<2x128xf32> to vector<2x32xf32>
    %34 = arith.mulf %31, %32 : vector<2x32xf32>
    %35 = math.tanh %34 : vector<2x32xf32>
    %36 = arith.mulf %33, %35 : vector<2x32xf32>
    %cst_9 = arith.constant dense<0.000000e+00> : vector<2x128xf32>
    %37 = tpu.matmul %36, %1, %cst_9 {dimension_numbers = #tpu.dot_dimension_numbers<[1], [0], [0], [1], [0, 0, 1, 1], [], []>} : vector<2x32xf32>, vector<32x128xf32>, vector<2x128xf32> -> vector<2x128xf32>
    %38 = arith.addf %13, %37 : vector<2x128xf32>
    %39 = arith.addf %38, %38 : vector<2x128xf32>
    %40 = arith.select %19, %39, %38 : vector<2x128xi1>, vector<2x128xf32>
    %41 = arith.negf %40 : vector<2x128xf32>
    %42 = math.exp %41 : vector<2x128xf32>
    %cst_10 = arith.constant 1.000000e+00 : f32
    %43 = vector.broadcast %cst_10 : f32 to vector<2x128xf32>
    %44 = arith.addf %43, %42 : vector<2x128xf32>
    %45 = arith.divf %43, %44 : vector<2x128xf32>
    %46 = arith.addf %45, %45 : vector<2x128xf32>
    %cst_11 = arith.constant 1.000000e+00 : f32
    %47 = vector.broadcast %cst_11 : f32 to vector<2x128xf32>
    %48 = arith.subf %46, %47 : vector<2x128xf32>
    %49 = arith.select %19, %48, %45 : vector<2x128xi1>, vector<2x128xf32>
    %50 = vector.extract_strided_slice %49 {offsets = [0, 0], sizes = [2, 32], strides = [1, 1]} : vector<2x128xf32> to vector<2x32xf32>
    %51 = vector.extract_strided_slice %49 {offsets = [0, 32], sizes = [2, 32], strides = [1, 1]} : vector<2x128xf32> to vector<2x32xf32>
    %52 = vector.extract_strided_slice %49 {offsets = [0, 64], sizes = [2, 32], strides = [1, 1]} : vector<2x128xf32> to vector<2x32xf32>
    %53 = vector.extract_strided_slice %49 {offsets = [0, 96], sizes = [2, 32], strides = [1, 1]} : vector<2x128xf32> to vector<2x32xf32>
    %54 = arith.mulf %51, %34 : vector<2x32xf32>
    %55 = arith.mulf %50, %52 : vector<2x32xf32>
    %56 = arith.addf %54, %55 : vector<2x32xf32>
    %57 = math.tanh %56 : vector<2x32xf32>
    %58 = arith.mulf %53, %57 : vector<2x32xf32>
    %c0_12 = arith.constant 0 : index
    %c0_13 = arith.constant 0 : index
    %59 = vector.load %arg2[%c0_12, %c0_13] : memref<33x8xf32, #tpu.memory_space<vmem>>, vector<32x8xf32>
    %c32 = arith.constant 32 : index
    %c0_14 = arith.constant 0 : index
    %60 = vector.load %arg2[%c32, %c0_14] : memref<33x8xf32, #tpu.memory_space<vmem>>, vector<1x8xf32>
    %cst_15 = arith.constant 0.000000e+00 : f32
    %61 = vector.broadcast %cst_15 : f32 to vector<2x32xf32>
    %62 = arith.maximumf %58, %61 : vector<2x32xf32>
    %cst_16 = arith.constant dense<0.000000e+00> : vector<2x8xf32>
    %63 = tpu.matmul %62, %59, %cst_16 {dimension_numbers = #tpu.dot_dimension_numbers<[1], [0], [0], [1], [0, 0, 1, 1], [], []>} : vector<2x32xf32>, vector<32x8xf32>, vector<2x8xf32> -> vector<2x8xf32>
    %64 = vector.broadcast %60 : vector<1x8xf32> to vector<2x8xf32>
    %65 = arith.addf %63, %64 : vector<2x8xf32>
    %c0_17 = arith.constant 0 : index
    %c0_18 = arith.constant 0 : index
    %66 = vector.load %arg3[%c0_17, %c0_18] : memref<2x8xf32, #tpu.memory_space<vmem>>, vector<2x8xf32>
    tpu.vector_store %arg3[%c0_17, %c0_18], %65 {strides = array<i32>} : memref<2x8xf32, #tpu.memory_space<vmem>>, vector<2x8xf32>,
    return
  }
}

</mosaic_0001>

<llo_original>
// kernel: tpu_custom_call.1
$region0: #{tpu_custom_call.1}
  #allocation0 [shape = 'u32[]', space=smem, size = 0x4, offset = 0x4, fixed_abs, tag = 'smem constant byte address 0x4 - core index']
  #allocation1 [shape = 'u32[144,128]{1,0:T(1,128)}', space=vmem, size = 0x12000, scoped, tag = 'internal scratch']
  %s0 = inlined_call_operand.vmem [shape: f32[2,8,16], index: 0, kind: input, shape index: {}]
  %s1 = inlined_call_operand.hbm [shape: f32[49,128], index: 1, kind: input, shape index: {}]
  %s2 = inlined_call_operand.vmem [shape: f32[33,8], index: 2, kind: input, shape index: {}]
  %s3 = inlined_call_operand.hbm [shape: f32[2,8], index: 3, kind: output, shape index: {}]
  %s4 = sld [smem:[#allocation0]]
  $region26: #{tpu_custom_call.1} parent=0
    _
  %s6 = ssub.s32 1, %s4
  %s7 = scalar_select 0, %s6, %s4
  $region1: #{tpu_custom_call.1} parent=0
    #allocation2 [shape = 'u8[28672]{0}', space=vmem, size = 0x7000, scoped, tag = 'input window, operand 1, single buffered']
    #allocation3 [shape = 's32[1]{0}', space=sflag, size = 0x4, scoped, tag = 'scoped memory for tpu_custom_call.1']
    #allocation4 [shape = 's32[1]{0}', space=sflag, size = 0x4, scoped, tag = 'scoped memory for tpu_custom_call.1']
    #allocation5 [shape = 'u8[1024]{0}', space=vmem, size = 0x400, scoped, tag = 'output window, operand 0, single buffered']
    %8 = vsyncpa [#allocation3], 0
    %9 = vsyncpa [#allocation4], 0
    // Predicated region
    $region2: #{tpu_custom_call.1} parent=1 // pred_check
      _
    $region3: #{tpu_custom_call.1} parent=1 // pred_check_branch
      %11 = sbr.rel (0) target = $region5
    $region4: #{tpu_custom_call.1} parent=1 // pred_region
      _
    $region5: #{tpu_custom_call.1} parent=1 // pred_fallthru
      _
    // Predicated region
    $region6: #{tpu_custom_call.1} parent=1 // pred_check
      _
    $region7: #{tpu_custom_call.1} parent=1 // pred_check_branch
      %13 = sbr.rel (0) target = $region9
    $region8: #{tpu_custom_call.1} parent=1 // pred_region
      %s15 = ssub.s32 896, 896
      %16 = vsyncadd [#allocation3], %s15
      %s17 = sshll.u32 [#allocation2], 4
      %s18 = int_to_ptr.vmem [resolvable:$true] %s17
      %23 = dma.hbm_to_vmem [thread:$0]  %s1, 896, %s18, [#allocation3], 128, 128, 8
    $region9: #{tpu_custom_call.1} parent=1 // pred_fallthru
      _
    // Predicated region
    $region10: #{tpu_custom_call.1} parent=1 // pred_check
      _
    $region11: #{tpu_custom_call.1} parent=1 // pred_check_branch
      %25 = sbr.rel (0) target = $region13
    $region12: #{tpu_custom_call.1} parent=1 // pred_region
      _
    $region13: #{tpu_custom_call.1} parent=1 // pred_fallthru
      _
    // Predicated region
    $region14: #{tpu_custom_call.1} parent=1 // pred_check
      _
    $region15: #{tpu_custom_call.1} parent=1 // pred_check_branch
      %27 = sbr.rel (0) target = $region17
    $region16: #{tpu_custom_call.1} parent=1 // pred_region
      %28 = dma.done [#allocation3], 896
    $region17: #{tpu_custom_call.1} parent=1 // pred_fallthru
      _
    %v29 = vld [vmem:[#allocation2] sm:$0xff]
    %v30 = vld [vmem:[#allocation2 + $0x8] sm:$0xff]
    %v31 = vld [vmem:[#allocation2 + $0x10] sm:$0xff]
    %v32 = vld [vmem:[#allocation2 + $0x18] sm:$0xff]
    %v33 = vld [vmem:[#allocation2 + $0x20] sm:$0xff]
    %v34 = vld [vmem:[#allocation2 + $0x28] sm:$0xff]
    %v35 = vld [vmem:[#allocation2 + $0x30] sm:$0x1]
    %v36 = vld [vmem:[%s0] sm:$0xff]
    %v37 = vld [vmem:[%s0 + $0x8] sm:$0xff]
    %v38 = vlaneseq
    %v39 = vshrl.u32 %v38, 7
    %v40 = vsub.s32 0, %v39
    %v41 = vrot.slane %v35, %v40
    %v44 = vrot.slane %v37, 7
    %vm45 = vcmask 1041409
    %v46 = vsel %vm45, %v44, %v36
    %vm47 = vcmask 130048
    %v48 = vsel %vm47, %v46, 0
    %50 = vmatprep.subr.mxu0 0.0
    %51 = vmatpush1.msra.mxu0 0.0
    %52 = vmatprep.subr.mxu0 0.0
    %53 = vmatpush1.msra.mxu0 0.0
    %54 = vmatprep.subr.mxu0 0.0
    %55 = vmatpush1.msra.mxu0 0.0
    %56 = vmatprep.subr.mxu0 0.0
    %57 = vmatpush1.msra.mxu0 0.0
    %58 = vmatprep.subr.mxu0 0.0
    %59 = vmatpush1.msra.mxu0 0.0
    %60 = vmatprep.subr.mxu0 0.0
    %61 = vmatpush1.msra.mxu0 0.0
    %62 = vmatprep.subr.mxu0 0.0
    %63 = vmatpush1.msra.mxu0 0.0
    %64 = vmatprep.subr.mxu0 0.0
    %65 = vmatpush1.msra.mxu0 0.0
    %66 = vmatprep.subr.mxu0 0.0
    %67 = vmatpush1.msra.mxu0 0.0
    %68 = vmatprep.subr.mxu0 0.0
    %69 = vmatpush1.msra.mxu0 0.0
    %70 = vmatprep.subr.mxu0 0.0
    %71 = vmatpush1.msra.mxu0 0.0
    %72 = vmatprep.subr.mxu0 0.0
    %73 = vmatpush1.msra.mxu0 0.0
    %74 = vmatprep.subr.mxu0 0.0
    %75 = vmatpush1.msra.mxu0 0.0
    %76 = vmatprep.subr.mxu0 0.0
    %77 = vmatpush1.msra.mxu0 0.0
    %78 = vmatprep.subr.mxu0 0.0
    %79 = vmatpush1.msra.mxu0 %v30
    %80 = vmatprep.subr.mxu0 0.0
    %81 = vmatpush1.msra.mxu0 %v29
    %82 = vmatprep.subr.mxu0 0.0
    %83 = vmatpush2.msra.mxu0 0.0
    %84 = vmatprep.subr.mxu0 0.0
    %85 = vmatpush2.msra.mxu0 0.0
    %86 = vmatprep.subr.mxu0 0.0
    %87 = vmatpush2.msra.mxu0 0.0
    %88 = vmatprep.subr.mxu0 0.0
    %89 = vmatpush2.msra.mxu0 0.0
    %90 = vmatprep.subr.mxu0 0.0
    %91 = vmatpush2.msra.mxu0 0.0
    %92 = vmatprep.subr.mxu0 0.0
    %93 = vmatpush2.msra.mxu0 0.0
    %94 = vmatprep.subr.mxu0 0.0
    %95 = vmatpush2.msra.mxu0 0.0
    %96 = vmatprep.subr.mxu0 0.0
    %97 = vmatpush2.msra.mxu0 0.0
    %98 = vmatprep.subr.mxu0 0.0
    %99 = vmatpush2.msra.mxu0 0.0
    %100 = vmatprep.subr.mxu0 0.0
    %101 = vmatpush2.msra.mxu0 0.0
    %102 = vmatprep.subr.mxu0 0.0
    %103 = vmatpush2.msra.mxu0 0.0
    %104 = vmatprep.subr.mxu0 0.0
    %105 = vmatpush2.msra.mxu0 0.0
    %106 = vmatprep.subr.mxu0 0.0
    %107 = vmatpush2.msra.mxu0 0.0
    %108 = vmatprep.subr.mxu0 0.0
    %109 = vmatpush2.msra.mxu0 0.0
    %110 = vmatprep.subr.mxu0 0.0
    %111 = vmatpush2.msra.mxu0 0.0
    %112 = vmatprep.subr.mxu0 0.0
    %113 = vmatpush2.msra.mxu0 0.0
    %114 = vmatprep.mubr.f32.mxu0 0.0
    %115 = vmatmul.mubr.f32.gmra.mxu0 %v48
    %v116 = vpop.f32.mrf.mxu0
    %v117 = vadd.f32 %v41, %v116
    %v118 = vpop.f32.mrf.mxu0
    %119 = vdwg.mxu0
    %v120 = vrot.slane %v36, 1
    %v121 = vsel %vm45, %v37, %v120
    %v122 = vsel %vm47, %v121, 0
    %124 = vmatprep.subr.mxu0 0.0
    %125 = vmatpush1.msra.mxu0 0.0
    %126 = vmatprep.subr.mxu0 0.0
    %127 = vmatpush1.msra.mxu0 0.0
    %128 = vmatprep.subr.mxu0 0.0
    %129 = vmatpush1.msra.mxu0 0.0
    %130 = vmatprep.subr.mxu0 0.0
    %131 = vmatpush1.msra.mxu0 0.0
    %132 = vmatprep.subr.mxu0 0.0
    %133 = vmatpush1.msra.mxu0 0.0
    %134 = vmatprep.subr.mxu0 0.0
    %135 = vmatpush1.msra.mxu0 0.0
    %136 = vmatprep.subr.mxu0 0.0
    %137 = vmatpush1.msra.mxu0 0.0
    %138 = vmatprep.subr.mxu0 0.0
    %139 = vmatpush1.msra.mxu0 0.0
    %140 = vmatprep.subr.mxu0 0.0
    %141 = vmatpush1.msra.mxu0 0.0
    %142 = vmatprep.subr.mxu0 0.0
    %143 = vmatpush1.msra.mxu0 0.0
    %144 = vmatprep.subr.mxu0 0.0
    %145 = vmatpush1.msra.mxu0 0.0
    %146 = vmatprep.subr.mxu0 0.0
    %147 = vmatpush1.msra.mxu0 0.0
    %148 = vmatprep.subr.mxu0 0.0
    %149 = vmatpush1.msra.mxu0 0.0
    %150 = vmatprep.subr.mxu0 0.0
    %151 = vmatpush1.msra.mxu0 0.0
    %152 = vmatprep.subr.mxu0 0.0
    %153 = vmatpush1.msra.mxu0 %v30
    %154 = vmatprep.subr.mxu0 0.0
    %155 = vmatpush1.msra.mxu0 %v29
    %156 = vmatprep.subr.mxu0 0.0
    %157 = vmatpush2.msra.mxu0 0.0
    %158 = vmatprep.subr.mxu0 0.0
    %159 = vmatpush2.msra.mxu0 0.0
    %160 = vmatprep.subr.mxu0 0.0
    %161 = vmatpush2.msra.mxu0 0.0
    %162 = vmatprep.subr.mxu0 0.0
    %163 = vmatpush2.msra.mxu0 0.0
    %164 = vmatprep.subr.mxu0 0.0
    %165 = vmatpush2.msra.mxu0 0.0
    %166 = vmatprep.subr.mxu0 0.0
    %167 = vmatpush2.msra.mxu0 0.0
    %168 = vmatprep.subr.mxu0 0.0
    %169 = vmatpush2.msra.mxu0 0.0
    %170 = vmatprep.subr.mxu0 0.0
    %171 = vmatpush2.msra.mxu0 0.0
    %172 = vmatprep.subr.mxu0 0.0
    %173 = vmatpush2.msra.mxu0 0.0
    %174 = vmatprep.subr.mxu0 0.0
    %175 = vmatpush2.msra.mxu0 0.0
    %176 = vmatprep.subr.mxu0 0.0
    %177 = vmatpush2.msra.mxu0 0.0
    %178 = vmatprep.subr.mxu0 0.0
    %179 = vmatpush2.msra.mxu0 0.0
    %180 = vmatprep.subr.mxu0 0.0
    %181 = vmatpush2.msra.mxu0 0.0
    %182 = vmatprep.subr.mxu0 0.0
    %183 = vmatpush2.msra.mxu0 0.0
    %184 = vmatprep.subr.mxu0 0.0
    %185 = vmatpush2.msra.mxu0 0.0
    %186 = vmatprep.subr.mxu0 0.0
    %187 = vmatpush2.msra.mxu0 0.0
    %188 = vmatprep.mubr.f32.mxu0 0.0
    %189 = vmatmul.mubr.f32.gmra.mxu0 %v122
    %v190 = vpop.f32.mrf.mxu0
    %v191 = vadd.f32 %v41, %v190
    %v192 = vpop.f32.mrf.mxu0
    %193 = vdwg.mxu0
    %v194 = vlaneseq
    %v195 = vand.u32 %v194, 127
    %vm196 = vcmp.ge.s32.totalorder %v195, 64
    %vm197 = vcmp.lt.s32.totalorder %v195, 96
    %vm198 = vmand %vm196, %vm197
    %v199 = vadd.f32 %v117, %v117
    %v200 = vsel %vm198, %v199, %v117
    %v201 = vxor.u32 %v200, 2147483648
    %v202 = vmul.f32 %v201, 1.442695
    %v203 = vpow.pop %v202
    %v204 = vadd.f32 %v203, 1.0
    %v205 = vrcp.pop %v204
    %v206 = vmul.f32 1.0, %v205
    %v207 = vadd.f32 %v206, %v206
    %v208 = vsub.f32 %v207, 1.0
    %v209 = vsel %vm198, %v208, %v206
    %211 = vrot.lane.b32.xlu0 %v209, 64
    %v212 = vpop.permute.xlu0 %211
    %v214 = vmul.f32 %v209, %v212
    %v215 = vtanh.pop %v214
    %217 = vrot.lane.b32.xlu0 %v215, 96
    %v218 = vpop.permute.xlu0 %217
    %v220 = vmul.f32 %v209, %v218
    %222 = vrot.lane.b32.xlu0 %v220, 32
    %v223 = vpop.permute.xlu0 %222
    %vm224 = vcmask 261120
    %v225 = vsel %vm224, %v223, 0
    %227 = vmatprep.subr.mxu0 0.0
    %228 = vmatpush1.msra.mxu0 0.0
    %229 = vmatprep.subr.mxu0 0.0
    %230 = vmatpush1.msra.mxu0 0.0
    %231 = vmatprep.subr.mxu0 0.0
    %232 = vmatpush1.msra.mxu0 0.0
    %233 = vmatprep.subr.mxu0 0.0
    %234 = vmatpush1.msra.mxu0 0.0
    %235 = vmatprep.subr.mxu0 0.0
    %236 = vmatpush1.msra.mxu0 0.0
    %237 = vmatprep.subr.mxu0 0.0
    %238 = vmatpush1.msra.mxu0 0.0
    %239 = vmatprep.subr.mxu0 0.0
    %240 = vmatpush1.msra.mxu0 0.0
    %241 = vmatprep.subr.mxu0 0.0
    %242 = vmatpush1.msra.mxu0 0.0
    %243 = vmatprep.subr.mxu0 0.0
    %244 = vmatpush1.msra.mxu0 0.0
    %245 = vmatprep.subr.mxu0 0.0
    %246 = vmatpush1.msra.mxu0 0.0
    %247 = vmatprep.subr.mxu0 0.0
    %248 = vmatpush1.msra.mxu0 0.0
    %249 = vmatprep.subr.mxu0 0.0
    %250 = vmatpush1.msra.mxu0 0.0
    %251 = vmatprep.subr.mxu0 0.0
    %252 = vmatpush1.msra.mxu0 %v34
    %253 = vmatprep.subr.mxu0 0.0
    %254 = vmatpush1.msra.mxu0 %v33
    %255 = vmatprep.subr.mxu0 0.0
    %256 = vmatpush1.msra.mxu0 %v32
    %257 = vmatprep.subr.mxu0 0.0
    %258 = vmatpush1.msra.mxu0 %v31
    %259 = vmatprep.subr.mxu0 0.0
    %260 = vmatpush2.msra.mxu0 0.0
    %261 = vmatprep.subr.mxu0 0.0
    %262 = vmatpush2.msra.mxu0 0.0
    %263 = vmatprep.subr.mxu0 0.0
    %264 = vmatpush2.msra.mxu0 0.0
    %265 = vmatprep.subr.mxu0 0.0
    %266 = vmatpush2.msra.mxu0 0.0
    %267 = vmatprep.subr.mxu0 0.0
    %268 = vmatpush2.msra.mxu0 0.0
    %269 = vmatprep.subr.mxu0 0.0
    %270 = vmatpush2.msra.mxu0 0.0
    %271 = vmatprep.subr.mxu0 0.0
    %272 = vmatpush2.msra.mxu0 0.0
    %273 = vmatprep.subr.mxu0 0.0
    %274 = vmatpush2.msra.mxu0 0.0
    %275 = vmatprep.subr.mxu0 0.0
    %276 = vmatpush2.msra.mxu0 0.0
    %277 = vmatprep.subr.mxu0 0.0
    %278 = vmatpush2.msra.mxu0 0.0
    %279 = vmatprep.subr.mxu0 0.0
    %280 = vmatpush2.msra.mxu0 0.0
    %281 = vmatprep.subr.mxu0 0.0
    %282 = vmatpush2.msra.mxu0 0.0
    %283 = vmatprep.subr.mxu0 0.0
    %284 = vmatpush2.msra.mxu0 0.0
    %285 = vmatprep.subr.mxu0 0.0
    %286 = vmatpush2.msra.mxu0 0.0
    %287 = vmatprep.subr.mxu0 0.0
    %288 = vmatpush2.msra.mxu0 0.0
    %289 = vmatprep.subr.mxu0 0.0
    %290 = vmatpush2.msra.mxu0 0.0
    %291 = vmatprep.mubr.f32.mxu0 0.0
    %292 = vmatmul.mubr.f32.gmra.mxu0 %v225
    %v293 = vpop.f32.mrf.mxu0
    %v294 = vadd.f32 0.0, %v293
    %v295 = vpop.f32.mrf.mxu0
    %296 = vdwg.mxu0
    %v297 = vadd.f32 %v191, %v294
    %v298 = vadd.f32 %v297, %v297
    %v299 = vsel %vm198, %v298, %v297
    %v300 = vxor.u32 %v299, 2147483648
    %v301 = vmul.f32 %v300, 1.442695
    %v302 = vpow.pop %v301
    %v303 = vadd.f32 %v302, 1.0
    %v304 = vrcp.pop %v303
    %v305 = vmul.f32 1.0, %v304
    %v306 = vadd.f32 %v305, %v305
    %v307 = vsub.f32 %v306, 1.0
    %v308 = vsel %vm198, %v307, %v305
    %310 = vrot.lane.b32.xlu0 %v214, 32
    %v311 = vpop.permute.xlu0 %310
    %v313 = vmul.f32 %v308, %v311
    %315 = vrot.lane.b32.xlu0 %v308, 64
    %v316 = vpop.permute.xlu0 %315
    %v318 = vmul.f32 %v308, %v316
    %320 = vrot.lane.b32.xlu0 %v318, 32
    %v321 = vpop.permute.xlu0 %320
    %v323 = vadd.f32 %v313, %v321
    %v324 = vtanh.pop %v323
    %326 = vrot.lane.b32.xlu0 %v324, 64
    %v327 = vpop.permute.xlu0 %326
    %v329 = vmul.f32 %v308, %v327
    %v330 = vld [vmem:[%s2] sm:$0xff]
    %v331 = vld [vmem:[%s2 + $0x8] sm:$0xff]
    %v332 = vld [vmem:[%s2 + $0x10] sm:$0xff]
    %v333 = vld [vmem:[%s2 + $0x18] sm:$0xff]
    %v334 = vld [vmem:[%s2 + $0x20] sm:$0x1]
    %v335 = vmax.f32 %v329, 0.0
    %v336 = vlaneseq
    %v337 = vshrl.u32 %v336, 7
    %v338 = vsub.s32 0, %v337
    %v339 = vrot.slane %v334, %v338
    %341 = vrot.lane.b32.xlu0 %v335, 32
    %v342 = vpop.permute.xlu0 %341
    %v343 = vsel %vm224, %v342, 0
    %345 = vmatprep.subr.mxu0 0.0
    %346 = vmatpush1.msra.mxu0 0.0
    %347 = vmatprep.subr.mxu0 0.0
    %348 = vmatpush1.msra.mxu0 0.0
    %349 = vmatprep.subr.mxu0 0.0
    %350 = vmatpush1.msra.mxu0 0.0
    %351 = vmatprep.subr.mxu0 0.0
    %352 = vmatpush1.msra.mxu0 0.0
    %353 = vmatprep.subr.mxu0 0.0
    %354 = vmatpush1.msra.mxu0 0.0
    %355 = vmatprep.subr.mxu0 0.0
    %356 = vmatpush1.msra.mxu0 0.0
    %357 = vmatprep.subr.mxu0 0.0
    %358 = vmatpush1.msra.mxu0 0.0
    %359 = vmatprep.subr.mxu0 0.0
    %360 = vmatpush1.msra.mxu0 0.0
    %361 = vmatprep.subr.mxu0 0.0
    %362 = vmatpush1.msra.mxu0 0.0
    %363 = vmatprep.subr.mxu0 0.0
    %364 = vmatpush1.msra.mxu0 0.0
    %365 = vmatprep.subr.mxu0 0.0
    %366 = vmatpush1.msra.mxu0 0.0
    %367 = vmatprep.subr.mxu0 0.0
    %368 = vmatpush1.msra.mxu0 0.0
    %369 = vmatprep.subr.mxu0 0.0
    %370 = vmatpush1.msra.mxu0 %v333
    %371 = vmatprep.subr.mxu0 0.0
    %372 = vmatpush1.msra.mxu0 %v332
    %373 = vmatprep.subr.mxu0 0.0
    %374 = vmatpush1.msra.mxu0 %v331
    %375 = vmatprep.subr.mxu0 0.0
    %376 = vmatpush1.msra.mxu0 %v330
    %377 = vmatprep.subr.mxu0 0.0
    %378 = vmatpush2.msra.mxu0 0.0
    %379 = vmatprep.subr.mxu0 0.0
    %380 = vmatpush2.msra.mxu0 0.0
    %381 = vmatprep.subr.mxu0 0.0
    %382 = vmatpush2.msra.mxu0 0.0
    %383 = vmatprep.subr.mxu0 0.0
    %384 = vmatpush2.msra.mxu0 0.0
    %385 = vmatprep.subr.mxu0 0.0
    %386 = vmatpush2.msra.mxu0 0.0
    %387 = vmatprep.subr.mxu0 0.0
    %388 = vmatpush2.msra.mxu0 0.0
    %389 = vmatprep.subr.mxu0 0.0
    %390 = vmatpush2.msra.mxu0 0.0
    %391 = vmatprep.subr.mxu0 0.0
    %392 = vmatpush2.msra.mxu0 0.0
    %393 = vmatprep.subr.mxu0 0.0
    %394 = vmatpush2.msra.mxu0 0.0
    %395 = vmatprep.subr.mxu0 0.0
    %396 = vmatpush2.msra.mxu0 0.0
    %397 = vmatprep.subr.mxu0 0.0
    %398 = vmatpush2.msra.mxu0 0.0
    %399 = vmatprep.subr.mxu0 0.0
    %400 = vmatpush2.msra.mxu0 0.0
    %401 = vmatprep.subr.mxu0 0.0
    %402 = vmatpush2.msra.mxu0 0.0
    %403 = vmatprep.subr.mxu0 0.0
    %404 = vmatpush2.msra.mxu0 0.0
    %405 = vmatprep.subr.mxu0 0.0
    %406 = vmatpush2.msra.mxu0 0.0
    %407 = vmatprep.subr.mxu0 0.0
    %408 = vmatpush2.msra.mxu0 0.0
    %409 = vmatprep.mubr.f32.mxu0 0.0
    %410 = vmatmul.mubr.f32.gmra.mxu0 %v343
    %v411 = vpop.f32.mrf.mxu0
    %v412 = vadd.f32 %v339, %v411
    %v413 = vpop.f32.mrf.mxu0
    %414 = vdwg.mxu0
    %vm415 = vcmask 58368
    %416 = vst.msk [vmem:[#allocation5] sm:$0x3] %vm415, %v412
    // Predicated region
    $region18: #{tpu_custom_call.1} parent=1 // pred_check
      _
    $region19: #{tpu_custom_call.1} parent=1 // pred_check_branch
      %418 = sbr.rel (0) target = $region21
    $region20: #{tpu_custom_call.1} parent=1 // pred_region
      %s420 = ssub.s32 32, 32
      %421 = vsyncadd [#allocation4], %s420
      %s423 = sshll.u32 [#allocation5], 4
      %s424 = int_to_ptr.vmem [resolvable:$true] %s423
      %426 = dma.vmem_to_hbm [thread:$0]  %s424, 32, %s3, [#allocation4]
    $region21: #{tpu_custom_call.1} parent=1 // pred_fallthru
      _
    // Predicated region
    $region22: #{tpu_custom_call.1} parent=1 // pred_check
      _
    $region23: #{tpu_custom_call.1} parent=1 // pred_check_branch
      %428 = sbr.rel (0) target = $region25
    $region24: #{tpu_custom_call.1} parent=1 // pred_region
      %429 = dma.done [#allocation4], 32
    $region25: #{tpu_custom_call.1} parent=1 // pred_fallthru
      _
    %430 = vsyncpa [#allocation3], 1
    %431 = vsyncpa [#allocation4], 1

</llo_original>
